<compile_context>
chip_gen: v5e
topology: v5e:2x2
jax: 0.10.0
libtpu: 0.0.40
codegen_flags: <defaults>
</compile_context>

<pallas_src>
import jax
import jax.numpy as jnp
from jax.experimental import pallas as pl
from jax.experimental.pallas import tpu as pltpu


def _make_select_kernel(runs):
    """Build a zero-VMEM channel-gather kernel for a static run table.

    runs: tuple of (src_plane, dst_plane, n_planes) Python ints.  Each run is
    one contiguous HBM -> HBM DMA of n_planes full (H, W) channel planes.
    """

    def kernel(x_hbm, o_hbm, sems):
        # x_hbm : raw HBM ref, shape (C, H, W)      (memory_space=pl.ANY)
        # o_hbm : raw HBM ref, shape (n_sel, H, W)  (memory_space=pl.ANY)
        # sems  : DMA semaphores, shape (n_runs,)   -- one slot per run.
        copies = []
        for r, (src, dst, length) in enumerate(runs):
            cp = pltpu.make_async_copy(
                x_hbm.at[pl.ds(src, length)],
                o_hbm.at[pl.ds(dst, length)],
                sems.at[r],
            )
            cp.start()
            copies.append(cp)
        # All runs are now in flight simultaneously; drain each one with the
        # exact descriptor it was started with (per-run byte counts match).
        for cp in copies:
            cp.wait()

    return kernel


def channel_select(img, channels=(0, 1, 2), *, force_pallas=False,
                   small_bytes_threshold=1 << 20):
    """Pallas equivalent of ChannelSelect.forward: img[channels, ...].

    img:          (C, H, W) array.
    channels:     int or list/tuple of static channel indices (negatives OK),
                  in the requested output order.
    force_pallas: always take the Pallas DMA path (the default bypasses it for
                  tiny selections where the XLA gather is strictly faster).
    """
    squeeze = isinstance(channels, int)
    if squeeze:
        channels = [channels]
    C, H, W = img.shape

    # Normalize / validate host-side (indices are static Python ints in the
    # original module), so no out-of-range DMA can ever be issued.
    norm = []
    for c in channels:
        c = int(c)
        if not (-C <= c < C):
            raise ValueError(f"channel index {c} out of range for C={C}")
        norm.append(c % C)
    n_sel = len(norm)

    # Identity selection: nothing to move.
    if norm == list(range(C)):
        return img[0] if squeeze else img

    # Coalesce maximal runs of consecutive ascending source indices so each
    # run becomes a single contiguous DMA descriptor.
    runs = []  # (src_start_plane, dst_start_plane, run_length)
    i = 0
    while i < n_sel:
        j = i + 1
        while j < n_sel and norm[j] == norm[j - 1] + 1:
            j += 1
        runs.append((norm[i], i, j - i))
        i = j
    runs = tuple(runs)

    total_bytes = n_sel * H * W * jnp.dtype(img.dtype).itemsize
    if not force_pallas and total_bytes < small_bytes_threshold:
        # Tiny selection: pallas_call launch + descriptor overhead dominates;
        # the plain XLA gather is faster and may fuse away entirely.
        out = img[jnp.asarray(norm, dtype=jnp.int32)]
        return out[0] if squeeze else out

    out = pl.pallas_call(
        _make_select_kernel(runs),
        out_shape=jax.ShapeDtypeStruct((n_sel, H, W), img.dtype),
        grid_spec=pltpu.PrefetchScalarGridSpec(
            num_scalar_prefetch=0,
            grid=(1,),                                        # single program
            in_specs=[pl.BlockSpec(memory_space=pl.ANY)],     # raw HBM, manual DMA
            out_specs=pl.BlockSpec(memory_space=pl.ANY),      # raw HBM, manual DMA
            scratch_shapes=[pltpu.SemaphoreType.DMA((len(runs),))],
        ),
        compiler_params=pltpu.CompilerParams(
            dimension_semantics=("arbitrary",),
        ),
    )(img)

    if squeeze:
        out = out[0]
    return out


if __name__ == "__main__":
    key = jax.random.PRNGKey(0)
    # 4-channel image (e.g. RGB + NIR), small spatial size.
    img = jax.random.normal(key, (4, 16, 16), dtype=jnp.float32)

    # Default of the PyTorch module: keep RGB only.  force_pallas exercises
    # the kernel (one coalesced 3-plane DMA).
    out = jax.block_until_ready(channel_select(img, [0, 1, 2], force_pallas=True))
    ref = img[jnp.asarray([0, 1, 2])]
    assert out.shape == (3, 16, 16), out.shape
    assert out.dtype == img.dtype
    assert jnp.array_equal(out, ref), "mismatch vs. reference gather (RGB)"

    # Reordered selection: two runs of length 1.
    out2 = jax.block_until_ready(channel_select(img, [3, 1], force_pallas=True))
    assert jnp.array_equal(out2, img[jnp.asarray([3, 1])])

    # Negative index (PyTorch-style advanced indexing): two runs.
    out3 = jax.block_until_ready(channel_select(img, [-1, 0], force_pallas=True))
    assert jnp.array_equal(out3, img[jnp.asarray([3, 0])])

    # Mixed run lengths: one 2-plane run + one 1-plane run.
    out4 = jax.block_until_ready(channel_select(img, [2, 3, 0], force_pallas=True))
    assert jnp.array_equal(out4, img[jnp.asarray([2, 3, 0])])

    # Single int channel (squeezed), via the kernel.
    out5 = jax.block_until_ready(channel_select(img, 2, force_pallas=True))
    assert out5.shape == (16, 16) and jnp.array_equal(out5, img[2])

    # Default (non-forced) path on a tiny image bypasses Pallas: XLA gather.
    out6 = jax.block_until_ready(channel_select(img, [0, 1, 2]))
    assert jnp.array_equal(out6, ref)

    # Identity selection: pass-through.
    out7 = channel_select(img, [0, 1, 2, 3])
    assert jnp.array_equal(out7, img)

    print("KERNEL_OK")
</pallas_src>

<mosaic_0001>
module attributes {stable_mosaic.version = 11 : i64} {
  func.func @kernel(%arg0: i32, %arg1: memref<4x16x16xf32, #tpu.memory_space<any>>, %arg2: memref<3x16x16xf32, #tpu.memory_space<any>>, %arg3: memref<1x!tpu.dma_semaphore, #tpu.memory_space<semaphore_mem>>) attributes {dimension_semantics = [#tpu.dimension_semantics<arbitrary>], iteration_bounds = array<i64: 1>, scalar_prefetch = 0 : i64, scratch_operands = 1 : i64, tpu.core_type = #tpu.core_type<tc>, window_params = [{}, {}]} {
    %c0_i32 = arith.constant 0 : i32
    %c0_i32_0 = arith.constant 0 : i32
    %c0_i32_1 = arith.constant 0 : i32
    %c0_i32_2 = arith.constant 0 : i32
    %0 = tpu.memref_slice %arg1[%c0_i32_0, %c0_i32_1, %c0_i32_2] : memref<4x16x16xf32, #tpu.memory_space<any>> -> memref<3x16x16xf32, #tpu.memory_space<any>>
    %c0_i32_3 = arith.constant 0 : i32
    %c0_i32_4 = arith.constant 0 : i32
    %c0_i32_5 = arith.constant 0 : i32
    %1 = tpu.memref_slice %arg2[%c0_i32_3, %c0_i32_4, %c0_i32_5] : memref<3x16x16xf32, #tpu.memory_space<any>> -> memref<3x16x16xf32, #tpu.memory_space<any>>
    %2 = tpu.memref_slice %arg3[%c0_i32] : memref<1x!tpu.dma_semaphore, #tpu.memory_space<semaphore_mem>> -> memref<1x!tpu.dma_semaphore, #tpu.memory_space<semaphore_mem>>
    %3 = tpu.memref_squeeze %2 : memref<1x!tpu.dma_semaphore, #tpu.memory_space<semaphore_mem>> -> memref<!tpu.dma_semaphore, #tpu.memory_space<semaphore_mem>>
    tpu.enqueue_dma source(%0 : memref<3x16x16xf32, #tpu.memory_space<any>>) target(%1 : memref<3x16x16xf32, #tpu.memory_space<any>>) target_semaphore(%3 : memref<!tpu.dma_semaphore, #tpu.memory_space<semaphore_mem>>)
    %c0_i32_6 = arith.constant 0 : i32
    %c0_i32_7 = arith.constant 0 : i32
    %c0_i32_8 = arith.constant 0 : i32
    %c0_i32_9 = arith.constant 0 : i32
    %4 = tpu.memref_slice %arg1[%c0_i32_7, %c0_i32_8, %c0_i32_9] : memref<4x16x16xf32, #tpu.memory_space<any>> -> memref<3x16x16xf32, #tpu.memory_space<any>>
    %c0_i32_10 = arith.constant 0 : i32
    %c0_i32_11 = arith.constant 0 : i32
    %c0_i32_12 = arith.constant 0 : i32
    %5 = tpu.memref_slice %arg2[%c0_i32_10, %c0_i32_11, %c0_i32_12] : memref<3x16x16xf32, #tpu.memory_space<any>> -> memref<3x16x16xf32, #tpu.memory_space<any>>
    %6 = tpu.memref_slice %arg3[%c0_i32_6] : memref<1x!tpu.dma_semaphore, #tpu.memory_space<semaphore_mem>> -> memref<1x!tpu.dma_semaphore, #tpu.memory_space<semaphore_mem>>
    %7 = tpu.memref_squeeze %6 : memref<1x!tpu.dma_semaphore, #tpu.memory_space<semaphore_mem>> -> memref<!tpu.dma_semaphore, #tpu.memory_space<semaphore_mem>>
    tpu.wait_dma2 semaphore(%7 : memref<!tpu.dma_semaphore, #tpu.memory_space<semaphore_mem>>) src(%4 : memref<3x16x16xf32, #tpu.memory_space<any>>) dst(%5 : memref<3x16x16xf32, #tpu.memory_space<any>>)
    return
  }
}

</mosaic_0001>

<llo_original>
// kernel: tpu_custom_call.1
$region0: #{tpu_custom_call.1}
  #allocation0 [shape = 'u32[]', space=smem, size = 0x4, offset = 0x4, fixed_abs, tag = 'smem constant byte address 0x4 - core index']
  #allocation1 [shape = 'u32[72,128]{1,0:T(1,128)}', space=vmem, size = 0x9000, scoped, tag = 'internal scratch']
  #allocation2 [shape = 's32[1]{0}', space=sflag, size = 0x4, scoped, tag = 'scratch operand']
  #allocation3 [shape = 's32[]', space=sflag, size = 0x4, offset = 0, fixed_abs, tag = 'sflag constant byte address 0x0 - dummy sync flag']
  #allocation4 [shape = 'u32[0]{0}', space=smem, size = 0, offset = 0, fixed_abs, tag = 'smem constant byte address 0x0 - null']
  %s0 = inlined_call_operand.hbm [shape: f32[4,16,16], index: 0, kind: input, shape index: {}]
  %s1 = inlined_call_operand.hbm [shape: f32[3,16,16], index: 1, kind: output, shape index: {}]
  %s2 = sld [smem:[#allocation0]]
  $region2: #{tpu_custom_call.1} parent=0
    _
  %s4 = ssub.s32 1, %s2
  %s5 = scalar_select 0, %s4, %s2
  %s7 = sshll.u32 1, 14
  %s8 = sxor.u32 4294967295, %s7
  %s10 = sshll.u32 %s0, 4
  %s11 = int_to_ptr.hbm [resolvable:$true] %s10
  %s12 = sshll.u32 %s1, 4
  %s13 = int_to_ptr.hbm [resolvable:$true] %s12
  %16 = dma.general %s11, 768, %s13, [#allocation2], [#allocation3], [#allocation4], 0, 0
  %s17 = smul.u32 3, 16
  %s18 = smul.u32 %s17, 1
  %s19 = sshll.u32 %s18, 4
  %20 = dma.done [#allocation2], %s19
  %21 = vsyncmov [#allocation2]
  %s22 = vpop.sfrf %21
  %p23 = scmp.eq.s32.totalorder %s22, 0
  %p24 = pneg %p23
  %26 = shalt.err (%p24)

</llo_original>
